<compile_context>
chip_gen: v6e
topology: v6e:2x2x1
jax: 0.10.0
libtpu: 0.0.40
codegen_flags: <defaults>
</compile_context>

<pallas_src>
import functools

import jax
import jax.numpy as jnp
import numpy as np
from jax.experimental import pallas as pl
from jax.experimental.pallas import tpu as pltpu

IN_CHANNELS = 3
OUT_CHANNELS = 16
KERNEL_SIZE = 3
SCALE_FACTOR = 2.0


def _conv_scale_min_kernel(x_ref, w_ref, b_ref, o_ref, *, img_w):
    # x_ref: (Cin, N*H*W)        dense-lane input slab
    # w_ref: (Cout, 32)          tap-major (kh, kw, cin) weight, zero-padded K
    # b_ref: (Cout, 1)
    # o_ref: (1, N*H*W)          lane-dense output slab (128-multiple lanes)
    x = x_ref[...]                                           # (Cin, NHW)
    cin, nhw = x.shape
    taps = KERNEL_SIZE * KERNEL_SIZE

    # Roll-based im2col: one XLU lane rotation per tap, no tile-crossing
    # reshapes.  Row order is tap-major / cin-minor, matching the wrapper's
    # (Cout, KH, KW, Cin) weight reshape.  Wrap-around columns (h >= H_out or
    # w >= W_out, and across the image/batch boundary) are invalid and are
    # discarded by the wrapper slice.
    chunks = []
    for kh in range(KERNEL_SIZE):
        for kw in range(KERNEL_SIZE):
            off = kh * img_w + kw
            if off == 0:
                chunks.append(x)
            else:
                # roll(x, nhw - off) == roll(x, -off): column p picks x[p+off]
                chunks.append(pltpu.roll(x, (nhw - off) % nhw, axis=1))
    pad_rows = w_ref.shape[1] - cin * taps
    if pad_rows > 0:
        chunks.append(jnp.zeros((pad_rows, nhw), dtype=x.dtype))
    patches = jnp.concatenate(chunks, axis=0)                # (32, NHW)

    # Single MXU matmul: Cout on sublanes, every pixel on lanes.
    acc = jnp.dot(w_ref[...], patches,
                  preferred_element_type=jnp.float32)        # (16, NHW)
    acc = (acc + b_ref[...]) * jnp.float32(SCALE_FACTOR)

    # Channel min: 8-aligned halving minimum (pure VPU), then sublane reduce.
    half = acc.shape[0] // 2
    m = jnp.minimum(acc[:half], acc[half:])                  # (8, NHW)
    o_ref[...] = jnp.min(m, axis=0, keepdims=True).astype(o_ref.dtype)


@jax.jit
def conv_scale_min(x_nchw, w_oihw, b):
    """x_nchw: (N, Cin, H, W); w_oihw: (Cout, Cin, KH, KW); b: (Cout,)."""
    N, Cin, H, W = x_nchw.shape
    Cout, _, KH, KW = w_oihw.shape
    H_out, W_out = H - KH + 1, W - KW + 1
    NHW = N * H * W

    # Dense-last-dim input layout (Cin, N*H*W): one ~6 KiB transpose, done once.
    x2d = jnp.transpose(x_nchw, (1, 0, 2, 3)).reshape(Cin, NHW)

    # Tap-major weight (Cout, KH*KW*Cin), contraction dim zero-padded 27 -> 32.
    k_raw = KH * KW * Cin
    k_pad = 32
    w2d = jnp.transpose(w_oihw, (0, 2, 3, 1)).reshape(Cout, k_raw)
    w2d = jnp.pad(w2d, ((0, 0), (0, k_pad - k_raw)))
    b2 = b.reshape(Cout, 1)

    out_flat = pl.pallas_call(
        functools.partial(_conv_scale_min_kernel, img_w=W),
        out_shape=jax.ShapeDtypeStruct((1, NHW), x_nchw.dtype),
        in_specs=[
            pl.BlockSpec(memory_space=pltpu.MemorySpace.VMEM),
            pl.BlockSpec(memory_space=pltpu.MemorySpace.VMEM),
            pl.BlockSpec(memory_space=pltpu.MemorySpace.VMEM),
        ],
        out_specs=pl.BlockSpec(memory_space=pltpu.MemorySpace.VMEM),
    )(x2d, w2d, b2)

    # (1, N*H*W) -> (N, H, W); drop the wrapped-around border columns, then add
    # the keepdim channel axis to match torch.min(dim=1, keepdim=True).
    out = out_flat.reshape(N, H, W)[:, :H_out, :W_out]
    return out.reshape(N, 1, H_out, W_out)


def _reference(x_nchw, w_oihw, b):
    y = jax.lax.conv_general_dilated(
        x_nchw, w_oihw, window_strides=(1, 1), padding="VALID",
        dimension_numbers=("NCHW", "OIHW", "NCHW"))
    y = (y + b.reshape(1, -1, 1, 1)) * SCALE_FACTOR
    return jnp.min(y, axis=1, keepdims=True)


if __name__ == "__main__":
    key = jax.random.PRNGKey(0)
    kx, kwt, kb = jax.random.split(key, 3)

    N, H, W = 2, 16, 16
    x = jax.random.normal(kx, (N, IN_CHANNELS, H, W), dtype=jnp.float32)

    # Deterministic Conv2d-style uniform init.
    fan_in = IN_CHANNELS * KERNEL_SIZE * KERNEL_SIZE
    bound = 1.0 / np.sqrt(fan_in)
    weight = jax.random.uniform(
        kwt, (OUT_CHANNELS, IN_CHANNELS, KERNEL_SIZE, KERNEL_SIZE),
        dtype=jnp.float32, minval=-bound, maxval=bound)
    bias = jax.random.uniform(kb, (OUT_CHANNELS,), dtype=jnp.float32,
                              minval=-bound, maxval=bound)

    out = jax.block_until_ready(conv_scale_min(x, weight, bias))
    ref = jax.block_until_ready(_reference(x, weight, bias))

    assert out.shape == (N, 1, H - KERNEL_SIZE + 1, W - KERNEL_SIZE + 1), out.shape
    np.testing.assert_allclose(np.asarray(out), np.asarray(ref), rtol=1e-5, atol=1e-4)

    print("KERNEL_OK")
</pallas_src>

<mosaic_0001>
module attributes {stable_mosaic.version = 11 : i64} {
  func.func @_conv_scale_min_kernel(%arg0: memref<3x512xf32, #tpu.memory_space<vmem>>, %arg1: memref<16x32xf32, #tpu.memory_space<vmem>>, %arg2: memref<16x1xf32, #tpu.memory_space<vmem>>, %arg3: memref<1x512xf32, #tpu.memory_space<vmem>>) attributes {dimension_semantics = [], scalar_prefetch = 0 : i64, scratch_operands = 0 : i64, tpu.core_type = #tpu.core_type<tc>} {
    %c0 = arith.constant 0 : index
    %c0_0 = arith.constant 0 : index
    %0 = vector.load %arg0[%c0, %c0_0] : memref<3x512xf32, #tpu.memory_space<vmem>>, vector<3x512xf32>
    %c511_i32 = arith.constant 511 : i32
    %1 = tpu.dynamic_rotate %0 by %c511_i32 dim 1 : vector<3x512xf32>, i32 -> vector<3x512xf32>
    %c510_i32 = arith.constant 510 : i32
    %2 = tpu.dynamic_rotate %0 by %c510_i32 dim 1 : vector<3x512xf32>, i32 -> vector<3x512xf32>
    %c496_i32 = arith.constant 496 : i32
    %3 = tpu.dynamic_rotate %0 by %c496_i32 dim 1 : vector<3x512xf32>, i32 -> vector<3x512xf32>
    %c495_i32 = arith.constant 495 : i32
    %4 = tpu.dynamic_rotate %0 by %c495_i32 dim 1 : vector<3x512xf32>, i32 -> vector<3x512xf32>
    %c494_i32 = arith.constant 494 : i32
    %5 = tpu.dynamic_rotate %0 by %c494_i32 dim 1 : vector<3x512xf32>, i32 -> vector<3x512xf32>
    %c480_i32 = arith.constant 480 : i32
    %6 = tpu.dynamic_rotate %0 by %c480_i32 dim 1 : vector<3x512xf32>, i32 -> vector<3x512xf32>
    %c479_i32 = arith.constant 479 : i32
    %7 = tpu.dynamic_rotate %0 by %c479_i32 dim 1 : vector<3x512xf32>, i32 -> vector<3x512xf32>
    %c478_i32 = arith.constant 478 : i32
    %8 = tpu.dynamic_rotate %0 by %c478_i32 dim 1 : vector<3x512xf32>, i32 -> vector<3x512xf32>
    %cst = arith.constant 0.000000e+00 : f32
    %9 = vector.broadcast %cst : f32 to vector<5x512xf32>
    %10 = tpu.concatenate %0, %1, %2, %3, %4, %5, %6, %7, %8, %9 in 0 : vector<3x512xf32>, vector<3x512xf32>, vector<3x512xf32>, vector<3x512xf32>, vector<3x512xf32>, vector<3x512xf32>, vector<3x512xf32>, vector<3x512xf32>, vector<3x512xf32>, vector<5x512xf32> -> vector<32x512xf32>
    %c0_1 = arith.constant 0 : index
    %c0_2 = arith.constant 0 : index
    %11 = vector.load %arg1[%c0_1, %c0_2] : memref<16x32xf32, #tpu.memory_space<vmem>>, vector<16x32xf32>
    %cst_3 = arith.constant dense<0.000000e+00> : vector<16x512xf32>
    %12 = tpu.matmul %11, %10, %cst_3 {dimension_numbers = #tpu.dot_dimension_numbers<[1], [0], [0], [1], [0, 0, 1, 1], [], []>} : vector<16x32xf32>, vector<32x512xf32>, vector<16x512xf32> -> vector<16x512xf32>
    %c0_4 = arith.constant 0 : index
    %c0_5 = arith.constant 0 : index
    %13 = vector.load %arg2[%c0_4, %c0_5] : memref<16x1xf32, #tpu.memory_space<vmem>>, vector<16x1xf32>
    %14 = vector.broadcast %13 : vector<16x1xf32> to vector<16x512xf32>
    %15 = arith.addf %12, %14 : vector<16x512xf32>
    %cst_6 = arith.constant 2.000000e+00 : f32
    %16 = vector.broadcast %cst_6 : f32 to vector<16x512xf32>
    %17 = arith.mulf %15, %16 : vector<16x512xf32>
    %18 = vector.extract_strided_slice %17 {offsets = [0, 0], sizes = [8, 512], strides = [1, 1]} : vector<16x512xf32> to vector<8x512xf32>
    %19 = vector.extract_strided_slice %17 {offsets = [8, 0], sizes = [8, 512], strides = [1, 1]} : vector<16x512xf32> to vector<8x512xf32>
    %20 = arith.minimumf %18, %19 : vector<8x512xf32>
    %cst_7 = arith.constant dense<0x7F800000> : vector<512xf32>
    %21 = vector.multi_reduction <minimumf>, %20, %cst_7 [0] : vector<8x512xf32> to vector<512xf32>
    %22 = vector.shape_cast %21 : vector<512xf32> to vector<1x512xf32>
    %c0_8 = arith.constant 0 : index
    %c0_9 = arith.constant 0 : index
    %23 = vector.load %arg3[%c0_8, %c0_9] : memref<1x512xf32, #tpu.memory_space<vmem>>, vector<1x512xf32>
    tpu.vector_store %arg3[%c0_8, %c0_9], %22 {strides = array<i32>} : memref<1x512xf32, #tpu.memory_space<vmem>>, vector<1x512xf32>,
    return
  }
}

</mosaic_0001>

<llo_original>
// kernel: conv_scale_min.1
$region0: #{conv_scale_min.1}
  #allocation0 [shape = 'u32[]', space=smem, size = 0x4, offset = 0x4, fixed_abs, tag = 'smem constant byte address 0x4 - core index']
  #allocation1 [shape = 'u32[144,128]{1,0:T(1,128)}', space=vmem, size = 0x12000, scoped, tag = 'internal scratch']
  %s0 = inlined_call_operand.vmem [shape: f32[3,512], index: 0, kind: input, shape index: {}]
  %s1 = inlined_call_operand.vmem [shape: f32[16,32], index: 1, kind: input, shape index: {}]
  %s2 = inlined_call_operand.vmem [shape: f32[16,1], index: 2, kind: input, shape index: {}]
  %s3 = inlined_call_operand.vmem [shape: f32[1,512], index: 3, kind: output, shape index: {}]
  %s4 = sld [smem:[#allocation0]]
  $region22: #{conv_scale_min.1} parent=0
    _
  %s6 = ssub.s32 1, %s4
  %s7 = scalar_select 0, %s6, %s4
  // Predicated region
  $region2: #{conv_scale_min.1} parent=0 // pred_check
    _
  $region3: #{conv_scale_min.1} parent=0 // pred_check_branch
    %9 = sbr.rel (0) target = $region5
  $region4: #{conv_scale_min.1} parent=0 // pred_region
    _
  $region5: #{conv_scale_min.1} parent=0 // pred_fallthru
    _
  // Predicated region
  $region6: #{conv_scale_min.1} parent=0 // pred_check
    _
  $region7: #{conv_scale_min.1} parent=0 // pred_check_branch
    %11 = sbr.rel (0) target = $region9
  $region8: #{conv_scale_min.1} parent=0 // pred_region
    _
  $region9: #{conv_scale_min.1} parent=0 // pred_fallthru
    _
  // Predicated region
  $region10: #{conv_scale_min.1} parent=0 // pred_check
    _
  $region11: #{conv_scale_min.1} parent=0 // pred_check_branch
    %13 = sbr.rel (0) target = $region13
  $region12: #{conv_scale_min.1} parent=0 // pred_region
    _
  $region13: #{conv_scale_min.1} parent=0 // pred_fallthru
    _
  %v14 = vld [vmem:[%s0] sm:$0x77]
  %v15 = vld [vmem:[%s0 + $0x8] sm:$0x77]
  %v18 = vcombine.high %v14, %v14
  %v19 = vcombine.high %v15, %v15
  %22 = vrot.lane.b32.xlu0 %v14, 127
  %v23 = vpop.permute.xlu0 %22
  %24 = vrot.lane.b32.xlu0 %v18, 127
  %v25 = vpop.permute.xlu0 %24
  %26 = vrot.lane.b32.xlu0 %v15, 127
  %v27 = vpop.permute.xlu0 %26
  %28 = vrot.lane.b32.xlu0 %v19, 127
  %v29 = vpop.permute.xlu0 %28
  %v30 = vlaneseq
  %v31 = vand.u32 %v30, 127
  %vm32 = vcmp.lt.s32.totalorder %v31, 127
  %v33 = vsel %vm32, %v27, %v29
  %v34 = vsel %vm32, %v25, %v27
  %v35 = vsel %vm32, %v23, %v25
  %v36 = vsel %vm32, %v29, %v23
  %37 = vrot.lane.b32.xlu0 %v14, 126
  %v38 = vpop.permute.xlu0 %37
  %39 = vrot.lane.b32.xlu0 %v18, 126
  %v40 = vpop.permute.xlu0 %39
  %41 = vrot.lane.b32.xlu0 %v15, 126
  %v42 = vpop.permute.xlu0 %41
  %43 = vrot.lane.b32.xlu0 %v19, 126
  %v44 = vpop.permute.xlu0 %43
  %vm45 = vcmp.lt.s32.totalorder %v31, 126
  %v46 = vsel %vm45, %v42, %v44
  %v47 = vsel %vm45, %v40, %v42
  %v48 = vsel %vm45, %v38, %v40
  %v49 = vsel %vm45, %v44, %v38
  %50 = vrot.lane.b32.xlu0 %v14, 112
  %v51 = vpop.permute.xlu0 %50
  %52 = vrot.lane.b32.xlu0 %v18, 112
  %v53 = vpop.permute.xlu0 %52
  %54 = vrot.lane.b32.xlu0 %v15, 112
  %v55 = vpop.permute.xlu0 %54
  %56 = vrot.lane.b32.xlu0 %v19, 112
  %v57 = vpop.permute.xlu0 %56
  %vm58 = vcmp.lt.s32.totalorder %v31, 112
  %v59 = vsel %vm58, %v55, %v57
  %v60 = vsel %vm58, %v53, %v55
  %v61 = vsel %vm58, %v51, %v53
  %v62 = vsel %vm58, %v57, %v51
  %63 = vrot.lane.b32.xlu0 %v14, 111
  %v64 = vpop.permute.xlu0 %63
  %65 = vrot.lane.b32.xlu0 %v18, 111
  %v66 = vpop.permute.xlu0 %65
  %67 = vrot.lane.b32.xlu0 %v15, 111
  %v68 = vpop.permute.xlu0 %67
  %69 = vrot.lane.b32.xlu0 %v19, 111
  %v70 = vpop.permute.xlu0 %69
  %vm71 = vcmp.lt.s32.totalorder %v31, 111
  %v72 = vsel %vm71, %v68, %v70
  %v73 = vsel %vm71, %v66, %v68
  %v74 = vsel %vm71, %v64, %v66
  %v75 = vsel %vm71, %v70, %v64
  %76 = vrot.lane.b32.xlu0 %v14, 110
  %v77 = vpop.permute.xlu0 %76
  %78 = vrot.lane.b32.xlu0 %v18, 110
  %v79 = vpop.permute.xlu0 %78
  %80 = vrot.lane.b32.xlu0 %v15, 110
  %v81 = vpop.permute.xlu0 %80
  %82 = vrot.lane.b32.xlu0 %v19, 110
  %v83 = vpop.permute.xlu0 %82
  %vm84 = vcmp.lt.s32.totalorder %v31, 110
  %v85 = vsel %vm84, %v81, %v83
  %v86 = vsel %vm84, %v79, %v81
  %v87 = vsel %vm84, %v77, %v79
  %v88 = vsel %vm84, %v83, %v77
  %89 = vrot.lane.b32.xlu0 %v14, 96
  %v90 = vpop.permute.xlu0 %89
  %91 = vrot.lane.b32.xlu0 %v18, 96
  %v92 = vpop.permute.xlu0 %91
  %93 = vrot.lane.b32.xlu0 %v15, 96
  %v94 = vpop.permute.xlu0 %93
  %95 = vrot.lane.b32.xlu0 %v19, 96
  %v96 = vpop.permute.xlu0 %95
  %vm97 = vcmp.lt.s32.totalorder %v31, 96
  %v98 = vsel %vm97, %v94, %v96
  %v99 = vsel %vm97, %v92, %v94
  %v100 = vsel %vm97, %v90, %v92
  %v101 = vsel %vm97, %v96, %v90
  %102 = vrot.lane.b32.xlu0 %v14, 95
  %v103 = vpop.permute.xlu0 %102
  %104 = vrot.lane.b32.xlu0 %v18, 95
  %v105 = vpop.permute.xlu0 %104
  %106 = vrot.lane.b32.xlu0 %v15, 95
  %v107 = vpop.permute.xlu0 %106
  %108 = vrot.lane.b32.xlu0 %v19, 95
  %v109 = vpop.permute.xlu0 %108
  %vm110 = vcmp.lt.s32.totalorder %v31, 95
  %v111 = vsel %vm110, %v107, %v109
  %v112 = vsel %vm110, %v105, %v107
  %v113 = vsel %vm110, %v103, %v105
  %v114 = vsel %vm110, %v109, %v103
  %115 = vrot.lane.b32.xlu0 %v14, 94
  %v116 = vpop.permute.xlu0 %115
  %117 = vrot.lane.b32.xlu0 %v18, 94
  %v118 = vpop.permute.xlu0 %117
  %119 = vrot.lane.b32.xlu0 %v15, 94
  %v120 = vpop.permute.xlu0 %119
  %121 = vrot.lane.b32.xlu0 %v19, 94
  %v122 = vpop.permute.xlu0 %121
  %vm123 = vcmp.lt.s32.totalorder %v31, 94
  %v124 = vsel %vm123, %v120, %v122
  %v125 = vsel %vm123, %v118, %v120
  %v126 = vsel %vm123, %v116, %v118
  %v127 = vsel %vm123, %v122, %v116
  %v132 = vrot.slane %v35, 5
  %v133 = vrot.slane %v34, 5
  %v134 = vrot.slane %v33, 5
  %v135 = vrot.slane %v36, 5
  %v144 = vrot.slane %v48, 2
  %v145 = vrot.slane %v47, 2
  %v146 = vrot.slane %v46, 2
  %v147 = vrot.slane %v49, 2
  %v156 = vrot.slane %v61, 7
  %v157 = vrot.slane %v60, 7
  %v158 = vrot.slane %v59, 7
  %v159 = vrot.slane %v62, 7
  %v168 = vrot.slane %v74, 4
  %v169 = vrot.slane %v73, 4
  %v170 = vrot.slane %v72, 4
  %v171 = vrot.slane %v75, 4
  %v180 = vrot.slane %v87, 1
  %v181 = vrot.slane %v86, 1
  %v182 = vrot.slane %v85, 1
  %v183 = vrot.slane %v88, 1
  %v192 = vrot.slane %v100, 6
  %v193 = vrot.slane %v99, 6
  %v194 = vrot.slane %v98, 6
  %v195 = vrot.slane %v101, 6
  %v204 = vrot.slane %v113, 3
  %v205 = vrot.slane %v112, 3
  %v206 = vrot.slane %v111, 3
  %v207 = vrot.slane %v114, 3
  %vm212 = vcmask 1042432
  %v213 = vsel %vm212, %v14, %v132
  %v214 = vsel %vm212, %v18, %v133
  %v215 = vsel %vm212, %v15, %v134
  %v216 = vsel %vm212, %v19, %v135
  %vm217 = vcmask 1045504
  %v218 = vsel %vm217, %v213, %v144
  %v219 = vsel %vm217, %v214, %v145
  %v220 = vsel %vm217, %v215, %v146
  %v221 = vsel %vm217, %v216, %v147
  %vm222 = vcmask 1040384
  %v223 = vsel %vm222, %v144, %v156
  %v224 = vsel %vm222, %v145, %v157
  %v225 = vsel %vm222, %v146, %v158
  %v226 = vsel %vm222, %v147, %v159
  %vm227 = vcmask 1043456
  %v228 = vsel %vm227, %v223, %v168
  %v229 = vsel %vm227, %v224, %v169
  %v230 = vsel %vm227, %v225, %v170
  %v231 = vsel %vm227, %v226, %v171
  %vm232 = vcmask 1046528
  %v233 = vsel %vm232, %v228, %v180
  %v234 = vsel %vm232, %v229, %v181
  %v235 = vsel %vm232, %v230, %v182
  %v236 = vsel %vm232, %v231, %v183
  %vm237 = vcmask 1041408
  %v238 = vsel %vm237, %v180, %v192
  %v239 = vsel %vm237, %v181, %v193
  %v240 = vsel %vm237, %v182, %v194
  %v241 = vsel %vm237, %v183, %v195
  %vm242 = vcmask 1044480
  %v243 = vsel %vm242, %v238, %v204
  %v244 = vsel %vm242, %v239, %v205
  %v245 = vsel %vm242, %v240, %v206
  %v246 = vsel %vm242, %v241, %v207
  %v247 = vsel %vm212, %v126, 0.0
  %v248 = vsel %vm212, %v125, 0.0
  %v249 = vsel %vm212, %v124, 0.0
  %v250 = vsel %vm212, %v127, 0.0
  %v251 = vld [vmem:[%s1] sm:$0xff]
  %v252 = vld [vmem:[%s1 + $0x8] sm:$0xff]
  %v253 = vld [vmem:[%s2] sm:$0xff]
  %v254 = vld [vmem:[%s2 + $0x8] sm:$0xff]
  %256 = vset.pattern.permute.xlu0 0
  %257 = vperm.xlu0 %256, %v253
  %v258 = vpop.permute.xlu0 %257
  %261 = vset.pattern.permute.xlu0 0
  %262 = vperm.xlu0 %261, %v254
  %v263 = vpop.permute.xlu0 %262
  %vm265 = vcmask 261120
  %v267 = vsel %vm265, %v251, 0
  %v270 = vsel %vm265, %v252, 0
  %272 = vmatprep.subr.mxu0 0.0
  %273 = vmatpush1.msra.mxu0 0.0
  %274 = vmatprep.subr.mxu0 0.0
  %275 = vmatpush1.msra.mxu0 0.0
  %276 = vmatprep.subr.mxu0 0.0
  %277 = vmatpush1.msra.mxu0 0.0
  %278 = vmatprep.subr.mxu0 0.0
  %279 = vmatpush1.msra.mxu0 0.0
  %280 = vmatprep.subr.mxu0 0.0
  %281 = vmatpush1.msra.mxu0 0.0
  %282 = vmatprep.subr.mxu0 0.0
  %283 = vmatpush1.msra.mxu0 0.0
  %284 = vmatprep.subr.mxu0 0.0
  %285 = vmatpush1.msra.mxu0 0.0
  %286 = vmatprep.subr.mxu0 0.0
  %287 = vmatpush1.msra.mxu0 0.0
  %288 = vmatprep.subr.mxu0 0.0
  %289 = vmatpush1.msra.mxu0 0.0
  %290 = vmatprep.subr.mxu0 0.0
  %291 = vmatpush1.msra.mxu0 0.0
  %292 = vmatprep.subr.mxu0 0.0
  %293 = vmatpush1.msra.mxu0 0.0
  %294 = vmatprep.subr.mxu0 0.0
  %295 = vmatpush1.msra.mxu0 0.0
  %296 = vmatprep.subr.mxu0 %v248
  %297 = vmatpush1.msra.mxu0 %v247
  %298 = vmatprep.subr.mxu0 %v244
  %299 = vmatpush1.msra.mxu0 %v243
  %300 = vmatprep.subr.mxu0 %v234
  %301 = vmatpush1.msra.mxu0 %v233
  %302 = vmatprep.subr.mxu0 %v219
  %303 = vmatpush1.msra.mxu0 %v218
  %304 = vmatprep.subr.mxu0 0.0
  %305 = vmatpush2.msra.mxu0 0.0
  %306 = vmatprep.subr.mxu0 0.0
  %307 = vmatpush2.msra.mxu0 0.0
  %308 = vmatprep.subr.mxu0 0.0
  %309 = vmatpush2.msra.mxu0 0.0
  %310 = vmatprep.subr.mxu0 0.0
  %311 = vmatpush2.msra.mxu0 0.0
  %312 = vmatprep.subr.mxu0 0.0
  %313 = vmatpush2.msra.mxu0 0.0
  %314 = vmatprep.subr.mxu0 0.0
  %315 = vmatpush2.msra.mxu0 0.0
  %316 = vmatprep.subr.mxu0 0.0
  %317 = vmatpush2.msra.mxu0 0.0
  %318 = vmatprep.subr.mxu0 0.0
  %319 = vmatpush2.msra.mxu0 0.0
  %320 = vmatprep.subr.mxu0 0.0
  %321 = vmatpush2.msra.mxu0 0.0
  %322 = vmatprep.subr.mxu0 0.0
  %323 = vmatpush2.msra.mxu0 0.0
  %324 = vmatprep.subr.mxu0 0.0
  %325 = vmatpush2.msra.mxu0 0.0
  %326 = vmatprep.subr.mxu0 0.0
  %327 = vmatpush2.msra.mxu0 0.0
  %328 = vmatprep.subr.mxu0 0.0
  %329 = vmatpush2.msra.mxu0 0.0
  %330 = vmatprep.subr.mxu0 0.0
  %331 = vmatpush2.msra.mxu0 0.0
  %332 = vmatprep.subr.mxu0 0.0
  %333 = vmatpush2.msra.mxu0 0.0
  %334 = vmatprep.subr.mxu0 0.0
  %335 = vmatpush2.msra.mxu0 0.0
  %336 = vmatprep.mubr.f32.mxu0 0.0
  %337 = vmatmul.mubr.f32.gmra.mxu0 %v267
  %v338 = vpop.f32.mrf.mxu0
  %v339 = vadd.f32 %v258, %v338
  %v340 = vpop.f32.mrf.mxu0
  %v341 = vadd.f32 %v258, %v340
  %342 = vmatprep.mubr.f32.mxu0 0.0
  %343 = vmatmul.mubr.f32.gmra.mxu0 %v270
  %v344 = vpop.f32.mrf.mxu0
  %v345 = vadd.f32 %v263, %v344
  %v346 = vpop.f32.mrf.mxu0
  %v347 = vadd.f32 %v263, %v346
  %348 = vdwg.mxu0
  %349 = vmatprep.subr.mxu0 0.0
  %350 = vmatpush1.msra.mxu0 0.0
  %351 = vmatprep.subr.mxu0 0.0
  %352 = vmatpush1.msra.mxu0 0.0
  %353 = vmatprep.subr.mxu0 0.0
  %354 = vmatpush1.msra.mxu0 0.0
  %355 = vmatprep.subr.mxu0 0.0
  %356 = vmatpush1.msra.mxu0 0.0
  %357 = vmatprep.subr.mxu0 0.0
  %358 = vmatpush1.msra.mxu0 0.0
  %359 = vmatprep.subr.mxu0 0.0
  %360 = vmatpush1.msra.mxu0 0.0
  %361 = vmatprep.subr.mxu0 0.0
  %362 = vmatpush1.msra.mxu0 0.0
  %363 = vmatprep.subr.mxu0 0.0
  %364 = vmatpush1.msra.mxu0 0.0
  %365 = vmatprep.subr.mxu0 0.0
  %366 = vmatpush1.msra.mxu0 0.0
  %367 = vmatprep.subr.mxu0 0.0
  %368 = vmatpush1.msra.mxu0 0.0
  %369 = vmatprep.subr.mxu0 0.0
  %370 = vmatpush1.msra.mxu0 0.0
  %371 = vmatprep.subr.mxu0 0.0
  %372 = vmatpush1.msra.mxu0 0.0
  %373 = vmatprep.subr.mxu0 %v250
  %374 = vmatpush1.msra.mxu0 %v249
  %375 = vmatprep.subr.mxu0 %v246
  %376 = vmatpush1.msra.mxu0 %v245
  %377 = vmatprep.subr.mxu0 %v236
  %378 = vmatpush1.msra.mxu0 %v235
  %379 = vmatprep.subr.mxu0 %v221
  %380 = vmatpush1.msra.mxu0 %v220
  %381 = vmatprep.subr.mxu0 0.0
  %382 = vmatpush2.msra.mxu0 0.0
  %383 = vmatprep.subr.mxu0 0.0
  %384 = vmatpush2.msra.mxu0 0.0
  %385 = vmatprep.subr.mxu0 0.0
  %386 = vmatpush2.msra.mxu0 0.0
  %387 = vmatprep.subr.mxu0 0.0
  %388 = vmatpush2.msra.mxu0 0.0
  %389 = vmatprep.subr.mxu0 0.0
  %390 = vmatpush2.msra.mxu0 0.0
  %391 = vmatprep.subr.mxu0 0.0
  %392 = vmatpush2.msra.mxu0 0.0
  %393 = vmatprep.subr.mxu0 0.0
  %394 = vmatpush2.msra.mxu0 0.0
  %395 = vmatprep.subr.mxu0 0.0
  %396 = vmatpush2.msra.mxu0 0.0
  %397 = vmatprep.subr.mxu0 0.0
  %398 = vmatpush2.msra.mxu0 0.0
  %399 = vmatprep.subr.mxu0 0.0
  %400 = vmatpush2.msra.mxu0 0.0
  %401 = vmatprep.subr.mxu0 0.0
  %402 = vmatpush2.msra.mxu0 0.0
  %403 = vmatprep.subr.mxu0 0.0
  %404 = vmatpush2.msra.mxu0 0.0
  %405 = vmatprep.subr.mxu0 0.0
  %406 = vmatpush2.msra.mxu0 0.0
  %407 = vmatprep.subr.mxu0 0.0
  %408 = vmatpush2.msra.mxu0 0.0
  %409 = vmatprep.subr.mxu0 0.0
  %410 = vmatpush2.msra.mxu0 0.0
  %411 = vmatprep.subr.mxu0 0.0
  %412 = vmatpush2.msra.mxu0 0.0
  %413 = vmatprep.mubr.f32.mxu0 0.0
  %414 = vmatmul.mubr.f32.gmra.mxu0 %v267
  %v415 = vpop.f32.mrf.mxu0
  %v416 = vadd.f32 %v258, %v415
  %v417 = vpop.f32.mrf.mxu0
  %v418 = vadd.f32 %v258, %v417
  %419 = vmatprep.mubr.f32.mxu0 0.0
  %420 = vmatmul.mubr.f32.gmra.mxu0 %v270
  %v421 = vpop.f32.mrf.mxu0
  %v422 = vadd.f32 %v263, %v421
  %v423 = vpop.f32.mrf.mxu0
  %v424 = vadd.f32 %v263, %v423
  %425 = vdwg.mxu0
  %v426 = vmul.f32 %v339, 2.0
  %v427 = vmul.f32 %v341, 2.0
  %v428 = vmul.f32 %v416, 2.0
  %v429 = vmul.f32 %v418, 2.0
  %v430 = vmul.f32 %v345, 2.0
  %v431 = vmul.f32 %v347, 2.0
  %v432 = vmul.f32 %v422, 2.0
  %v433 = vmul.f32 %v424, 2.0
  %v434 = vmin.f32 %v426, %v430
  %v435 = vmin.f32 %v427, %v431
  %v436 = vmin.f32 %v428, %v432
  %v437 = vmin.f32 %v429, %v433
  %v438 = vrot.slane %v434, 4
  %v439 = vmin.f32 %v434, %v438
  %v440 = vrot.slane %v439, 2
  %v441 = vmin.f32 %v439, %v440
  %v442 = vrot.slane %v441, 1
  %v443 = vmin.f32 %v441, %v442
  %v444 = vrot.slane %v435, 4
  %v445 = vmin.f32 %v435, %v444
  %v446 = vrot.slane %v445, 2
  %v447 = vmin.f32 %v445, %v446
  %v448 = vrot.slane %v447, 1
  %v449 = vmin.f32 %v447, %v448
  %v450 = vrot.slane %v436, 4
  %v451 = vmin.f32 %v436, %v450
  %v452 = vrot.slane %v451, 2
  %v453 = vmin.f32 %v451, %v452
  %v454 = vrot.slane %v453, 1
  %v455 = vmin.f32 %v453, %v454
  %v456 = vrot.slane %v437, 4
  %v457 = vmin.f32 %v437, %v456
  %v458 = vrot.slane %v457, 2
  %v459 = vmin.f32 %v457, %v458
  %v460 = vrot.slane %v459, 1
  %v461 = vmin.f32 %v459, %v460
  %v466 = vcombine.low %v443, %v449
  %v467 = vcombine.low %v455, %v461
  %v469 = vunpack.c.l.s4 1966171168
  %v470 = vunpack.c.0.s8 %v469
  %v471 = vlaneseq
  %v472 = vshrl.u32 %v471, 7
  %v473 = vsub.s32 %v470, %v472
  %v474 = vrot.slane %v466, %v473
  %v476 = vunpack.c.l.s4 1966171168
  %v477 = vunpack.c.0.s8 %v476
  %v478 = vlaneseq
  %v479 = vshrl.u32 %v478, 7
  %v480 = vsub.s32 %v477, %v479
  %v481 = vrot.slane %v467, %v480
  %v482 = vcombine.low %v474, %v481
  %v484 = vunpack.c.l.s4 1966171168
  %v485 = vunpack.c.0.s8 %v484
  %v486 = vlaneseq
  %v487 = vshrl.u32 %v486, 7
  %v488 = vsub.s32 %v485, %v487
  %v489 = vrot.slane %v482, %v488
  %v491 = vlaneseq
  %vm492 = vcmp.ge.s32.totalorder %v491, 0
  %vm493 = vcmp.lt.s32.totalorder %v491, 512
  %vm494 = vmand %vm492, %vm493
  %495 = vst.msk [vmem:[%s3] sm:$0xf] %vm494, %v489
  // Predicated region
  $region14: #{conv_scale_min.1} parent=0 // pred_check
    _
  $region15: #{conv_scale_min.1} parent=0 // pred_check_branch
    %497 = sbr.rel (0) target = $region17
  $region16: #{conv_scale_min.1} parent=0 // pred_region
    _
  $region17: #{conv_scale_min.1} parent=0 // pred_fallthru
    _
  // Predicated region
  $region18: #{conv_scale_min.1} parent=0 // pred_check
    _
  $region19: #{conv_scale_min.1} parent=0 // pred_check_branch
    %499 = sbr.rel (0) target = $region21
  $region20: #{conv_scale_min.1} parent=0 // pred_region
    _
  $region21: #{conv_scale_min.1} parent=0 // pred_fallthru
    _

</llo_original>
